<compile_context>
chip_gen: v6e
topology: v6e:2x2x1
jax: 0.10.0
libtpu: 0.0.40
codegen_flags: <defaults>
</compile_context>

<pallas_src>
import jax
import jax.numpy as jnp
from jax.experimental import pallas as pl
from jax.experimental.pallas import tpu as pltpu

HIDDEN = 256
ACTION_DIM = 3
ACTION_PAD = 128       # head padded to one full lane width for the MXU / layout
MAX_TILE_B = 2048      # per perf review: ~10 MiB/step, fits every generation
SPLIT_THRESHOLD = 256  # above this, force >=2 grid steps (v7x megacore sharding)


def _round_up(x, m):
    return -(-x // m) * m


# --------------------------------------------------------------------------
# Kernel
# --------------------------------------------------------------------------
def actor_kernel(x_ref, w1_ref, w2_ref, w3_ref, b12_ref, b3ma_ref, o_ref):
    """Fused 3-layer MLP: relu(x@W1+b1) -> relu(.@W2+b2) -> tanh(.@W3+b3)*max_a."""
    # In-kernel cast of the f32 input tile (avoids a wrapper-side XLA pass).
    x = x_ref[...].astype(jnp.bfloat16)            # (tile_b, in_dim)
    b12 = b12_ref[...]                             # (2, HIDDEN)     rows = (b1, b2)
    b3ma = b3ma_ref[...]                           # (2, ACTION_PAD) rows = (b3, max_a)

    # Layer 1: bf16 matmul on the MXU, f32 accumulate; bias + ReLU in f32.
    h1 = jnp.dot(x, w1_ref[...], preferred_element_type=jnp.float32)
    h1 = jnp.maximum(h1 + b12[0:1, :], 0.0).astype(jnp.bfloat16)
    # Layer 2
    h2 = jnp.dot(h1, w2_ref[...], preferred_element_type=jnp.float32)
    h2 = jnp.maximum(h2 + b12[1:2, :], 0.0).astype(jnp.bfloat16)
    # Layer 3 (head padded to 128 lanes for the MXU) + tanh + per-action scale.
    y = jnp.dot(h2, w3_ref[...], preferred_element_type=jnp.float32) + b3ma[0:1, :]
    act = jnp.tanh(y) * b3ma[1:2, :]               # (tile_b, ACTION_PAD)
    # Store only the 3 real action lanes: 42x less HBM writeback than the
    # padded slab, and no post-kernel slice HLO.
    o_ref[...] = act[:, :ACTION_DIM]


# --------------------------------------------------------------------------
# One-time parameter preparation (NOT in the per-call path)
# --------------------------------------------------------------------------
def prepare_params(params, max_action):
    """Pack / pad / cast parameters once so the forward path has no prep ops."""
    w1, b1, w2, b2, w3, b3 = params
    w1 = w1.astype(jnp.bfloat16)
    w2 = w2.astype(jnp.bfloat16)
    w3p = (jnp.zeros((HIDDEN, ACTION_PAD), jnp.bfloat16)
           .at[:, :ACTION_DIM].set(w3.astype(jnp.bfloat16)))
    b12 = jnp.stack([b1, b2]).astype(jnp.float32)              # (2, HIDDEN)
    b3ma = jnp.zeros((2, ACTION_PAD), jnp.float32)
    b3ma = b3ma.at[0, :ACTION_DIM].set(b3)
    b3ma = b3ma.at[1, :ACTION_DIM].set(max_action)
    return (w1, w2, w3p, b12, b3ma)


# --------------------------------------------------------------------------
# Forward wrapper
# --------------------------------------------------------------------------
def actor_forward(x, packed_params):
    """x: (B, input_dim) f32.  Returns (B, ACTION_DIM) f32."""
    w1, w2, w3p, b12, b3ma = packed_params
    B, in_dim = x.shape

    # Batch tile selection:
    #  * tiny batches: single grid step over the (16-rounded) batch,
    #  * larger batches: at least two grid steps (v7x: one per TensorCore),
    #    per-step tile a multiple of 256 and capped at MAX_TILE_B.
    b_pad = max(16, _round_up(B, 16))
    if b_pad <= SPLIT_THRESHOLD:
        tile_b = b_pad
    else:
        tile_b = min(MAX_TILE_B, _round_up(-(-b_pad // 2), 256))
        b_pad = _round_up(b_pad, tile_b)

    xk = x
    if b_pad != B:
        xk = jnp.pad(xk, ((0, b_pad - B), (0, 0)))  # padded rows sliced off below

    grid = (b_pad // tile_b,)
    flops = 2 * b_pad * (in_dim * HIDDEN + HIDDEN * HIDDEN + HIDDEN * ACTION_PAD)
    bytes_accessed = (xk.size * 4 + w1.size * 2 + w2.size * 2 + w3p.size * 2
                      + b12.size * 4 + b3ma.size * 4 + b_pad * ACTION_DIM * 4)

    out = pl.pallas_call(
        actor_kernel,
        out_shape=jax.ShapeDtypeStruct((b_pad, ACTION_DIM), jnp.float32),
        grid=grid,
        in_specs=[
            pl.BlockSpec((tile_b, in_dim), lambda i: (i, 0)),       # x tile (f32)
            pl.BlockSpec((in_dim, HIDDEN), lambda i: (0, 0)),       # W1 (resident)
            pl.BlockSpec((HIDDEN, HIDDEN), lambda i: (0, 0)),       # W2 (resident)
            pl.BlockSpec((HIDDEN, ACTION_PAD), lambda i: (0, 0)),   # W3 (resident)
            pl.BlockSpec((2, HIDDEN), lambda i: (0, 0)),            # (b1, b2)
            pl.BlockSpec((2, ACTION_PAD), lambda i: (0, 0)),        # (b3, max_a)
        ],
        out_specs=pl.BlockSpec((tile_b, ACTION_DIM), lambda i: (i, 0)),
        compiler_params=pltpu.CompilerParams(
            dimension_semantics=("parallel",),
            vmem_limit_bytes=48 * 1024 * 1024),  # headroom for 2048-row tiles on v5e
        cost_estimate=pl.CostEstimate(
            flops=flops,
            transcendentals=b_pad * ACTION_PAD,
            bytes_accessed=bytes_accessed),
    )(xk, w1, w2, w3p, b12, b3ma)

    if b_pad != B:
        out = out[:B]
    return out


# --------------------------------------------------------------------------
# Init + references
# --------------------------------------------------------------------------
def init_params(key, input_dim):
    """Deterministic init mimicking torch.nn.Linear's U(-1/sqrt(fan_in), ...)."""
    ks = jax.random.split(key, 6)

    def lin(kw, kb, fan_in, fan_out):
        bound = 1.0 / jnp.sqrt(fan_in)
        w = jax.random.uniform(kw, (fan_in, fan_out), jnp.float32, -bound, bound)
        b = jax.random.uniform(kb, (fan_out,), jnp.float32, -bound, bound)
        return w, b

    w1, b1 = lin(ks[0], ks[1], input_dim, HIDDEN)
    w2, b2 = lin(ks[2], ks[3], HIDDEN, HIDDEN)
    w3, b3 = lin(ks[4], ks[5], HIDDEN, ACTION_DIM)
    return (w1, b1, w2, b2, w3, b3)


def actor_reference_f32(x, params, max_action):
    w1, b1, w2, b2, w3, b3 = params
    h1 = jnp.maximum(x @ w1 + b1, 0.0)
    h2 = jnp.maximum(h1 @ w2 + b2, 0.0)
    return jnp.tanh(h2 @ w3 + b3) * max_action


def actor_reference_bf16(x, params, max_action):
    """Matches the kernel's arithmetic: bf16 operands, f32 accumulation."""
    w1, b1, w2, b2, w3, b3 = params
    h = jnp.dot(x.astype(jnp.bfloat16), w1.astype(jnp.bfloat16),
                preferred_element_type=jnp.float32)
    h = jnp.maximum(h + b1, 0.0).astype(jnp.bfloat16)
    h = jnp.dot(h, w2.astype(jnp.bfloat16), preferred_element_type=jnp.float32)
    h = jnp.maximum(h + b2, 0.0).astype(jnp.bfloat16)
    y = jnp.dot(h, w3.astype(jnp.bfloat16), preferred_element_type=jnp.float32) + b3
    return jnp.tanh(y) * max_action


# --------------------------------------------------------------------------
if __name__ == "__main__":
    key = jax.random.PRNGKey(0)
    k_x, k_p = jax.random.split(key)

    batch, input_dim = 8, 32
    x = jax.random.normal(k_x, (batch, input_dim), jnp.float32)
    params = init_params(k_p, input_dim)
    max_action = jnp.array([0.5, 0.5, 1.0], jnp.float32)

    packed = prepare_params(params, max_action)   # one-time, outside hot path
    fwd = jax.jit(actor_forward)

    out = jax.block_until_ready(fwd(x, packed))
    assert out.shape == (batch, ACTION_DIM)

    # Tight check vs. a bf16-matched reference, loose check vs. the f32 module.
    ref_bf16 = actor_reference_bf16(x, params, max_action)
    ref_f32 = actor_reference_f32(x, params, max_action)
    assert jnp.allclose(out, ref_bf16, atol=1e-3, rtol=1e-3)
    assert jnp.allclose(out, ref_f32, atol=5e-2, rtol=5e-2)

    print("KERNEL_OK")
</pallas_src>

<mosaic_0001>
module attributes {stable_mosaic.version = 11 : i64} {
  func.func @actor_kernel(%arg0: i32, %arg1: memref<16x32xf32, #tpu.memory_space<vmem>>, %arg2: memref<32x256xbf16, #tpu.memory_space<vmem>>, %arg3: memref<256x256xbf16, #tpu.memory_space<vmem>>, %arg4: memref<256x128xbf16, #tpu.memory_space<vmem>>, %arg5: memref<2x256xf32, #tpu.memory_space<vmem>>, %arg6: memref<2x128xf32, #tpu.memory_space<vmem>>, %arg7: memref<16x3xf32, #tpu.memory_space<vmem>>) attributes {dimension_semantics = [#tpu.dimension_semantics<parallel>], iteration_bounds = array<i64: 1>, scalar_prefetch = 0 : i64, scratch_operands = 0 : i64, tpu.core_type = #tpu.core_type<tc>, window_params = [{transform_indices = @transform_0, window_bounds = array<i64: 16, 32>}, {pipeline_mode = #tpu.pipeline_mode<synchronous>, transform_indices = @transform_1, window_bounds = array<i64: 32, 256>}, {pipeline_mode = #tpu.pipeline_mode<synchronous>, transform_indices = @transform_2, window_bounds = array<i64: 256, 256>}, {pipeline_mode = #tpu.pipeline_mode<synchronous>, transform_indices = @transform_3, window_bounds = array<i64: 256, 128>}, {pipeline_mode = #tpu.pipeline_mode<synchronous>, transform_indices = @transform_4, window_bounds = array<i64: 2, 256>}, {pipeline_mode = #tpu.pipeline_mode<synchronous>, transform_indices = @transform_5, window_bounds = array<i64: 2, 128>}, {transform_indices = @transform_6, window_bounds = array<i64: 16, 3>}]} {
    %c0 = arith.constant 0 : index
    %c0_0 = arith.constant 0 : index
    %0 = vector.load %arg1[%c0, %c0_0] : memref<16x32xf32, #tpu.memory_space<vmem>>, vector<16x32xf32>
    %1 = arith.truncf %0 : vector<16x32xf32> to vector<16x32xbf16>
    %c0_1 = arith.constant 0 : index
    %c0_2 = arith.constant 0 : index
    %2 = vector.load %arg5[%c0_1, %c0_2] : memref<2x256xf32, #tpu.memory_space<vmem>>, vector<2x256xf32>
    %c0_3 = arith.constant 0 : index
    %c0_4 = arith.constant 0 : index
    %3 = vector.load %arg6[%c0_3, %c0_4] : memref<2x128xf32, #tpu.memory_space<vmem>>, vector<2x128xf32>
    %c0_5 = arith.constant 0 : index
    %c0_6 = arith.constant 0 : index
    %4 = vector.load %arg2[%c0_5, %c0_6] : memref<32x256xbf16, #tpu.memory_space<vmem>>, vector<32x256xbf16>
    %cst = arith.constant dense<0.000000e+00> : vector<16x256xf32>
    %5 = tpu.matmul %1, %4, %cst {dimension_numbers = #tpu.dot_dimension_numbers<[1], [0], [0], [1], [0, 0, 1, 1], [], []>} : vector<16x32xbf16>, vector<32x256xbf16>, vector<16x256xf32> -> vector<16x256xf32>
    %6 = vector.extract_strided_slice %2 {offsets = [0, 0], sizes = [1, 256], strides = [1, 1]} : vector<2x256xf32> to vector<1x256xf32>
    %7 = vector.broadcast %6 : vector<1x256xf32> to vector<16x256xf32>
    %8 = arith.addf %5, %7 : vector<16x256xf32>
    %cst_7 = arith.constant 0.000000e+00 : f32
    %9 = vector.broadcast %cst_7 : f32 to vector<16x256xf32>
    %10 = arith.maximumf %8, %9 : vector<16x256xf32>
    %11 = arith.truncf %10 : vector<16x256xf32> to vector<16x256xbf16>
    %c0_8 = arith.constant 0 : index
    %c0_9 = arith.constant 0 : index
    %12 = vector.load %arg3[%c0_8, %c0_9] : memref<256x256xbf16, #tpu.memory_space<vmem>>, vector<256x256xbf16>
    %cst_10 = arith.constant dense<0.000000e+00> : vector<16x256xf32>
    %13 = tpu.matmul %11, %12, %cst_10 {dimension_numbers = #tpu.dot_dimension_numbers<[1], [0], [0], [1], [0, 0, 1, 1], [], []>} : vector<16x256xbf16>, vector<256x256xbf16>, vector<16x256xf32> -> vector<16x256xf32>
    %14 = vector.extract_strided_slice %2 {offsets = [1, 0], sizes = [1, 256], strides = [1, 1]} : vector<2x256xf32> to vector<1x256xf32>
    %15 = vector.broadcast %14 : vector<1x256xf32> to vector<16x256xf32>
    %16 = arith.addf %13, %15 : vector<16x256xf32>
    %cst_11 = arith.constant 0.000000e+00 : f32
    %17 = vector.broadcast %cst_11 : f32 to vector<16x256xf32>
    %18 = arith.maximumf %16, %17 : vector<16x256xf32>
    %19 = arith.truncf %18 : vector<16x256xf32> to vector<16x256xbf16>
    %c0_12 = arith.constant 0 : index
    %c0_13 = arith.constant 0 : index
    %20 = vector.load %arg4[%c0_12, %c0_13] : memref<256x128xbf16, #tpu.memory_space<vmem>>, vector<256x128xbf16>
    %cst_14 = arith.constant dense<0.000000e+00> : vector<16x128xf32>
    %21 = tpu.matmul %19, %20, %cst_14 {dimension_numbers = #tpu.dot_dimension_numbers<[1], [0], [0], [1], [0, 0, 1, 1], [], []>} : vector<16x256xbf16>, vector<256x128xbf16>, vector<16x128xf32> -> vector<16x128xf32>
    %22 = vector.extract_strided_slice %3 {offsets = [0, 0], sizes = [1, 128], strides = [1, 1]} : vector<2x128xf32> to vector<1x128xf32>
    %23 = vector.broadcast %22 : vector<1x128xf32> to vector<16x128xf32>
    %24 = arith.addf %21, %23 : vector<16x128xf32>
    %25 = math.tanh %24 : vector<16x128xf32>
    %26 = vector.extract_strided_slice %3 {offsets = [1, 0], sizes = [1, 128], strides = [1, 1]} : vector<2x128xf32> to vector<1x128xf32>
    %27 = vector.broadcast %26 : vector<1x128xf32> to vector<16x128xf32>
    %28 = arith.mulf %25, %27 : vector<16x128xf32>
    %29 = vector.extract_strided_slice %28 {offsets = [0, 0], sizes = [16, 3], strides = [1, 1]} : vector<16x128xf32> to vector<16x3xf32>
    %c0_15 = arith.constant 0 : index
    %c0_16 = arith.constant 0 : index
    %30 = vector.load %arg7[%c0_15, %c0_16] : memref<16x3xf32, #tpu.memory_space<vmem>>, vector<16x3xf32>
    tpu.vector_store %arg7[%c0_15, %c0_16], %29 {strides = array<i32>} : memref<16x3xf32, #tpu.memory_space<vmem>>, vector<16x3xf32>,
    return
  }
  func.func @transform_0(%arg0: i32) -> (i32, i32) {
    %c0_i32 = arith.constant 0 : i32
    %c0_i32_0 = arith.constant 0 : i32
    return %arg0, %c0_i32 : i32, i32
  }
  func.func @transform_1(%arg0: i32) -> (i32, i32) {
    %c0_i32 = arith.constant 0 : i32
    %c0_i32_0 = arith.constant 0 : i32
    %c0_i32_1 = arith.constant 0 : i32
    return %c0_i32, %c0_i32_0 : i32, i32
  }
  func.func @transform_2(%arg0: i32) -> (i32, i32) {
    %c0_i32 = arith.constant 0 : i32
    %c0_i32_0 = arith.constant 0 : i32
    %c0_i32_1 = arith.constant 0 : i32
    return %c0_i32, %c0_i32_0 : i32, i32
  }
  func.func @transform_3(%arg0: i32) -> (i32, i32) {
    %c0_i32 = arith.constant 0 : i32
    %c0_i32_0 = arith.constant 0 : i32
    %c0_i32_1 = arith.constant 0 : i32
    return %c0_i32, %c0_i32_0 : i32, i32
  }
  func.func @transform_4(%arg0: i32) -> (i32, i32) {
    %c0_i32 = arith.constant 0 : i32
    %c0_i32_0 = arith.constant 0 : i32
    %c0_i32_1 = arith.constant 0 : i32
    return %c0_i32, %c0_i32_0 : i32, i32
  }
  func.func @transform_5(%arg0: i32) -> (i32, i32) {
    %c0_i32 = arith.constant 0 : i32
    %c0_i32_0 = arith.constant 0 : i32
    %c0_i32_1 = arith.constant 0 : i32
    return %c0_i32, %c0_i32_0 : i32, i32
  }
  func.func @transform_6(%arg0: i32) -> (i32, i32) {
    %c0_i32 = arith.constant 0 : i32
    %c0_i32_0 = arith.constant 0 : i32
    return %arg0, %c0_i32 : i32, i32
  }
}

</mosaic_0001>

<llo_original>
// kernel: actor_forward.1
$region0: #{actor_forward.1}
  #allocation0 [shape = 'u32[]', space=smem, size = 0x4, offset = 0x4, fixed_abs, tag = 'smem constant byte address 0x4 - core index']
  #allocation1 [shape = 'u32[144,128]{1,0:T(1,128)}', space=vmem, size = 0x12000, scoped, tag = 'internal scratch']
  %s0 = inlined_call_operand.vmem [shape: f32[16,32], index: 0, kind: input, shape index: {}]
  %s1 = inlined_call_operand.hbm [shape: bf16[32,256], index: 1, kind: input, shape index: {}]
  %s2 = inlined_call_operand.hbm [shape: bf16[256,256], index: 2, kind: input, shape index: {}]
  %s3 = inlined_call_operand.hbm [shape: bf16[256,128], index: 3, kind: input, shape index: {}]
  %s4 = inlined_call_operand.vmem [shape: f32[2,256], index: 4, kind: input, shape index: {}]
  %s5 = inlined_call_operand.vmem [shape: f32[2,128], index: 5, kind: input, shape index: {}]
  %s6 = inlined_call_operand.vmem [shape: f32[16,3], index: 6, kind: output, shape index: {}]
  %s7 = sld [smem:[#allocation0]]
  $region46: #{actor_forward.1} parent=0
    _
  %s9 = ssub.s32 1, %s7
  %s10 = scalar_select 0, %s9, %s7
  $region1: #{actor_forward.1} parent=0
    #allocation2 [shape = 'u8[16384]{0}', space=vmem, size = 0x4000, scoped, tag = 'input window, operand 1, single buffered']
    #allocation3 [shape = 's32[1]{0}', space=sflag, size = 0x4, scoped, tag = 'scoped memory for actor_forward.1']
    #allocation4 [shape = 'u8[131072]{0}', space=vmem, size = 0x20000, scoped, tag = 'input window, operand 2, single buffered']
    #allocation5 [shape = 's32[1]{0}', space=sflag, size = 0x4, scoped, tag = 'scoped memory for actor_forward.1']
    #allocation6 [shape = 'u8[65536]{0}', space=vmem, size = 0x10000, scoped, tag = 'input window, operand 3, single buffered']
    %11 = vsyncpa [#allocation3], 0
    %12 = vsyncpa [#allocation5], 0
    // Predicated region
    $region2: #{actor_forward.1} parent=1 // pred_check
      _
    $region3: #{actor_forward.1} parent=1 // pred_check_branch
      %14 = sbr.rel (0) target = $region5
    $region4: #{actor_forward.1} parent=1 // pred_region
      _
    $region5: #{actor_forward.1} parent=1 // pred_fallthru
      _
    // Predicated region
    $region6: #{actor_forward.1} parent=1 // pred_check
      _
    $region7: #{actor_forward.1} parent=1 // pred_check_branch
      %16 = sbr.rel (0) target = $region9
    $region8: #{actor_forward.1} parent=1 // pred_region
      %s18 = ssub.s32 512, 512
      %19 = vsyncadd [#allocation3], %s18
      %s20 = sshll.u32 [#allocation2], 4
      %s21 = int_to_ptr.vmem [resolvable:$true] %s20
      %26 = dma.hbm_to_vmem [thread:$0]  %s1, 512, %s21, [#allocation3], 128, 128, 8
    $region9: #{actor_forward.1} parent=1 // pred_fallthru
      _
    // Predicated region
    $region10: #{actor_forward.1} parent=1 // pred_check
      _
    $region11: #{actor_forward.1} parent=1 // pred_check_branch
      %28 = sbr.rel (0) target = $region13
    $region12: #{actor_forward.1} parent=1 // pred_region
      %s30 = ssub.s32 4096, 4096
      %31 = vsyncadd [#allocation5], %s30
      %s32 = sshll.u32 [#allocation4], 4
      %s33 = int_to_ptr.vmem [resolvable:$true] %s32
      %38 = dma.hbm_to_vmem [thread:$0]  %s2, 4096, %s33, [#allocation5], 128, 128, 8
    $region13: #{actor_forward.1} parent=1 // pred_fallthru
      _
    // Predicated region
    $region14: #{actor_forward.1} parent=1 // pred_check
      _
    $region15: #{actor_forward.1} parent=1 // pred_check_branch
      %40 = sbr.rel (0) target = $region17
    $region16: #{actor_forward.1} parent=1 // pred_region
      %s42 = ssub.s32 2048, 2048
      %43 = vsyncadd [#allocation5], %s42
      %s44 = sshll.u32 [#allocation6], 4
      %s45 = int_to_ptr.vmem [resolvable:$true] %s44
      %50 = dma.hbm_to_vmem [thread:$0]  %s3, 2048, %s45, [#allocation5], 64, 64, 4
    $region17: #{actor_forward.1} parent=1 // pred_fallthru
      _
    // Predicated region
    $region18: #{actor_forward.1} parent=1 // pred_check
      _
    $region19: #{actor_forward.1} parent=1 // pred_check_branch
      %52 = sbr.rel (0) target = $region21
    $region20: #{actor_forward.1} parent=1 // pred_region
      _
    $region21: #{actor_forward.1} parent=1 // pred_fallthru
      _
    // Predicated region
    $region22: #{actor_forward.1} parent=1 // pred_check
      _
    $region23: #{actor_forward.1} parent=1 // pred_check_branch
      %54 = sbr.rel (0) target = $region25
    $region24: #{actor_forward.1} parent=1 // pred_region
      _
    $region25: #{actor_forward.1} parent=1 // pred_fallthru
      _
    // Predicated region
    $region26: #{actor_forward.1} parent=1 // pred_check
      _
    $region27: #{actor_forward.1} parent=1 // pred_check_branch
      %56 = sbr.rel (0) target = $region29
    $region28: #{actor_forward.1} parent=1 // pred_region
      %57 = dma.done [#allocation3], 512
    $region29: #{actor_forward.1} parent=1 // pred_fallthru
      _
    // Predicated region
    $region30: #{actor_forward.1} parent=1 // pred_check
      _
    $region31: #{actor_forward.1} parent=1 // pred_check_branch
      %59 = sbr.rel (0) target = $region33
    $region32: #{actor_forward.1} parent=1 // pred_region
      %60 = dma.done [#allocation5], 4096
    $region33: #{actor_forward.1} parent=1 // pred_fallthru
      _
    // Predicated region
    $region34: #{actor_forward.1} parent=1 // pred_check
      _
    $region35: #{actor_forward.1} parent=1 // pred_check_branch
      %62 = sbr.rel (0) target = $region37
    $region36: #{actor_forward.1} parent=1 // pred_region
      %63 = dma.done [#allocation5], 2048
    $region37: #{actor_forward.1} parent=1 // pred_fallthru
      _
    %v65 = vld [vmem:[%s0] sm:$0xff]
    %v66 = vld [vmem:[%s0 + $0x8] sm:$0xff]
    %v67 = vpack.c.bf16 %v66, %v65
    %v68 = vld [vmem:[%s4] sm:$0xf]
    %v69 = vld [vmem:[%s5] sm:$0x3]
    %v70 = vld [vmem:[#allocation2] sm:$0xff]
    %v71 = vld [vmem:[#allocation2 + $0x8] sm:$0xff]
    %v72 = vld [vmem:[#allocation2 + $0x10] sm:$0xff]
    %v73 = vld [vmem:[#allocation2 + $0x18] sm:$0xff]
    %v75 = vlaneseq
    %v76 = vshrl.u32 %v75, 7
    %v77 = vsub.s32 0, %v76
    %v78 = vrot.slane %v68, %v77
    %v79 = vlaneseq
    %v80 = vshrl.u32 %v79, 7
    %v81 = vsub.s32 2, %v80
    %v82 = vrot.slane %v68, %v81
    %v85 = vlaneseq
    %v86 = vshrl.u32 %v85, 7
    %v87 = vsub.s32 0, %v86
    %v88 = vrot.slane %v78, %v87
    %v89 = vlaneseq
    %v90 = vshrl.u32 %v89, 7
    %v91 = vsub.s32 0, %v90
    %v92 = vrot.slane %v82, %v91
    %v97 = vunpack.c.l.b16 %v70
    %v98 = vunpack.c.h.b16 %v70
    %v99 = vunpack.c.l.b16 %v71
    %v100 = vunpack.c.h.b16 %v71
    %v101 = vunpack.c.l.b16 %v72
    %v102 = vunpack.c.h.b16 %v72
    %v103 = vunpack.c.l.b16 %v73
    %v104 = vunpack.c.h.b16 %v73
    %v105 = vpack.c.b16 %v99, %v97
    %v106 = vpack.c.b16 %v100, %v98
    %v107 = vpack.c.b16 %v103, %v101
    %v108 = vpack.c.b16 %v104, %v102
    %vm113 = vcmask 261120
    %v115 = vsel %vm113, %v67, 0
    %117 = vmatprep.subr.bf16.mxu0 0
    %118 = vmatpush1.bf16.msra.mxu0 0
    %119 = vmatprep.subr.bf16.mxu0 0
    %120 = vmatpush1.bf16.msra.mxu0 0
    %121 = vmatprep.subr.bf16.mxu0 0
    %122 = vmatpush1.bf16.msra.mxu0 0
    %123 = vmatprep.subr.bf16.mxu0 0
    %124 = vmatpush1.bf16.msra.mxu0 0
    %125 = vmatprep.subr.bf16.mxu0 0
    %126 = vmatpush1.bf16.msra.mxu0 0
    %127 = vmatprep.subr.bf16.mxu0 0
    %128 = vmatpush1.bf16.msra.mxu0 0
    %129 = vmatprep.subr.bf16.mxu0 %v108
    %130 = vmatpush1.bf16.msra.mxu0 %v107
    %131 = vmatprep.subr.bf16.mxu0 %v106
    %132 = vmatpush1.bf16.msra.mxu0 %v105
    %133 = vmatprep.subr.bf16.mxu0 0
    %134 = vmatpush2.bf16.msra.mxu0 0
    %135 = vmatprep.subr.bf16.mxu0 0
    %136 = vmatpush2.bf16.msra.mxu0 0
    %137 = vmatprep.subr.bf16.mxu0 0
    %138 = vmatpush2.bf16.msra.mxu0 0
    %139 = vmatprep.subr.bf16.mxu0 0
    %140 = vmatpush2.bf16.msra.mxu0 0
    %141 = vmatprep.subr.bf16.mxu0 0
    %142 = vmatpush2.bf16.msra.mxu0 0
    %143 = vmatprep.subr.bf16.mxu0 0
    %144 = vmatpush2.bf16.msra.mxu0 0
    %145 = vmatprep.subr.bf16.mxu0 0
    %146 = vmatpush2.bf16.msra.mxu0 0
    %147 = vmatprep.subr.bf16.mxu0 0
    %148 = vmatpush2.bf16.msra.mxu0 0
    %149 = vmatprep.mubr.bf16.mxu0 0
    %150 = vmatmul.mubr.bf16.gmra.mxu0 %v115
    %v151 = vpop.f32.mrf.mxu0
    %v152 = vadd.f32 %v88, %v151
    %v153 = vpop.f32.mrf.mxu0
    %v154 = vadd.f32 %v92, %v153
    %v155 = vpop.f32.mrf.mxu0
    %v156 = vadd.f32 %v88, %v155
    %v157 = vpop.f32.mrf.mxu0
    %v158 = vadd.f32 %v92, %v157
    %159 = vdwg.mxu0
    %v160 = vmax.f32 %v152, 0.0
    %v161 = vmax.f32 %v154, 0.0
    %v162 = vmax.f32 %v156, 0.0
    %v163 = vmax.f32 %v158, 0.0
    %v164 = vpack.c.bf16 %v162, %v160
    %v165 = vpack.c.bf16 %v163, %v161
    %v166 = vld [vmem:[#allocation4] sm:$0xff]
    %v167 = vld [vmem:[#allocation4 + $0x8] sm:$0xff]
    %v168 = vld [vmem:[#allocation4 + $0x10] sm:$0xff]
    %v169 = vld [vmem:[#allocation4 + $0x18] sm:$0xff]
    %v170 = vld [vmem:[#allocation4 + $0x20] sm:$0xff]
    %v171 = vld [vmem:[#allocation4 + $0x28] sm:$0xff]
    %v172 = vld [vmem:[#allocation4 + $0x30] sm:$0xff]
    %v173 = vld [vmem:[#allocation4 + $0x38] sm:$0xff]
    %v174 = vld [vmem:[#allocation4 + $0x40] sm:$0xff]
    %v175 = vld [vmem:[#allocation4 + $0x48] sm:$0xff]
    %v176 = vld [vmem:[#allocation4 + $0x50] sm:$0xff]
    %v177 = vld [vmem:[#allocation4 + $0x58] sm:$0xff]
    %v178 = vld [vmem:[#allocation4 + $0x60] sm:$0xff]
    %v179 = vld [vmem:[#allocation4 + $0x68] sm:$0xff]
    %v180 = vld [vmem:[#allocation4 + $0x70] sm:$0xff]
    %v181 = vld [vmem:[#allocation4 + $0x78] sm:$0xff]
    %v182 = vld [vmem:[#allocation4 + $0x80] sm:$0xff]
    %v183 = vld [vmem:[#allocation4 + $0x88] sm:$0xff]
    %v184 = vld [vmem:[#allocation4 + $0x90] sm:$0xff]
    %v185 = vld [vmem:[#allocation4 + $0x98] sm:$0xff]
    %v186 = vld [vmem:[#allocation4 + $0xa0] sm:$0xff]
    %v187 = vld [vmem:[#allocation4 + $0xa8] sm:$0xff]
    %v188 = vld [vmem:[#allocation4 + $0xb0] sm:$0xff]
    %v189 = vld [vmem:[#allocation4 + $0xb8] sm:$0xff]
    %v190 = vld [vmem:[#allocation4 + $0xc0] sm:$0xff]
    %v191 = vld [vmem:[#allocation4 + $0xc8] sm:$0xff]
    %v192 = vld [vmem:[#allocation4 + $0xd0] sm:$0xff]
    %v193 = vld [vmem:[#allocation4 + $0xd8] sm:$0xff]
    %v194 = vld [vmem:[#allocation4 + $0xe0] sm:$0xff]
    %v195 = vld [vmem:[#allocation4 + $0xe8] sm:$0xff]
    %v196 = vld [vmem:[#allocation4 + $0xf0] sm:$0xff]
    %v197 = vld [vmem:[#allocation4 + $0xf8] sm:$0xff]
    %v198 = vlaneseq
    %v199 = vshrl.u32 %v198, 7
    %v200 = vsub.s32 1, %v199
    %v201 = vrot.slane %v68, %v200
    %v202 = vlaneseq
    %v203 = vshrl.u32 %v202, 7
    %v204 = vsub.s32 3, %v203
    %v205 = vrot.slane %v68, %v204
    %v208 = vlaneseq
    %v209 = vshrl.u32 %v208, 7
    %v210 = vsub.s32 1, %v209
    %v211 = vrot.slane %v201, %v210
    %v212 = vlaneseq
    %v213 = vshrl.u32 %v212, 7
    %v214 = vsub.s32 1, %v213
    %v215 = vrot.slane %v205, %v214
    %v248 = vunpack.c.l.b16 %v166
    %v249 = vunpack.c.h.b16 %v166
    %v250 = vunpack.c.l.b16 %v167
    %v251 = vunpack.c.h.b16 %v167
    %v252 = vunpack.c.l.b16 %v168
    %v253 = vunpack.c.h.b16 %v168
    %v254 = vunpack.c.l.b16 %v169
    %v255 = vunpack.c.h.b16 %v169
    %v256 = vunpack.c.l.b16 %v170
    %v257 = vunpack.c.h.b16 %v170
    %v258 = vunpack.c.l.b16 %v171
    %v259 = vunpack.c.h.b16 %v171
    %v260 = vunpack.c.l.b16 %v172
    %v261 = vunpack.c.h.b16 %v172
    %v262 = vunpack.c.l.b16 %v173
    %v263 = vunpack.c.h.b16 %v173
    %v264 = vunpack.c.l.b16 %v174
    %v265 = vunpack.c.h.b16 %v174
    %v266 = vunpack.c.l.b16 %v175
    %v267 = vunpack.c.h.b16 %v175
    %v268 = vunpack.c.l.b16 %v176
    %v269 = vunpack.c.h.b16 %v176
    %v270 = vunpack.c.l.b16 %v177
    %v271 = vunpack.c.h.b16 %v177
    %v272 = vunpack.c.l.b16 %v178
    %v273 = vunpack.c.h.b16 %v178
    %v274 = vunpack.c.l.b16 %v179
    %v275 = vunpack.c.h.b16 %v179
    %v276 = vunpack.c.l.b16 %v180
    %v277 = vunpack.c.h.b16 %v180
    %v278 = vunpack.c.l.b16 %v181
    %v279 = vunpack.c.h.b16 %v181
    %v280 = vunpack.c.l.b16 %v182
    %v281 = vunpack.c.h.b16 %v182
    %v282 = vunpack.c.l.b16 %v183
    %v283 = vunpack.c.h.b16 %v183
    %v284 = vunpack.c.l.b16 %v184
    %v285 = vunpack.c.h.b16 %v184
    %v286 = vunpack.c.l.b16 %v185
    %v287 = vunpack.c.h.b16 %v185
    %v288 = vunpack.c.l.b16 %v186
    %v289 = vunpack.c.h.b16 %v186
    %v290 = vunpack.c.l.b16 %v187
    %v291 = vunpack.c.h.b16 %v187
    %v292 = vunpack.c.l.b16 %v188
    %v293 = vunpack.c.h.b16 %v188
    %v294 = vunpack.c.l.b16 %v189
    %v295 = vunpack.c.h.b16 %v189
    %v296 = vunpack.c.l.b16 %v190
    %v297 = vunpack.c.h.b16 %v190
    %v298 = vunpack.c.l.b16 %v191
    %v299 = vunpack.c.h.b16 %v191
    %v300 = vunpack.c.l.b16 %v192
    %v301 = vunpack.c.h.b16 %v192
    %v302 = vunpack.c.l.b16 %v193
    %v303 = vunpack.c.h.b16 %v193
    %v304 = vunpack.c.l.b16 %v194
    %v305 = vunpack.c.h.b16 %v194
    %v306 = vunpack.c.l.b16 %v195
    %v307 = vunpack.c.h.b16 %v195
    %v308 = vunpack.c.l.b16 %v196
    %v309 = vunpack.c.h.b16 %v196
    %v310 = vunpack.c.l.b16 %v197
    %v311 = vunpack.c.h.b16 %v197
    %v312 = vpack.c.b16 %v250, %v248
    %v313 = vpack.c.b16 %v251, %v249
    %v314 = vpack.c.b16 %v254, %v252
    %v315 = vpack.c.b16 %v255, %v253
    %v316 = vpack.c.b16 %v258, %v256
    %v317 = vpack.c.b16 %v259, %v257
    %v318 = vpack.c.b16 %v262, %v260
    %v319 = vpack.c.b16 %v263, %v261
    %v320 = vpack.c.b16 %v266, %v264
    %v321 = vpack.c.b16 %v267, %v265
    %v322 = vpack.c.b16 %v270, %v268
    %v323 = vpack.c.b16 %v271, %v269
    %v324 = vpack.c.b16 %v274, %v272
    %v325 = vpack.c.b16 %v275, %v273
    %v326 = vpack.c.b16 %v278, %v276
    %v327 = vpack.c.b16 %v279, %v277
    %v328 = vpack.c.b16 %v282, %v280
    %v329 = vpack.c.b16 %v283, %v281
    %v330 = vpack.c.b16 %v286, %v284
    %v331 = vpack.c.b16 %v287, %v285
    %v332 = vpack.c.b16 %v290, %v288
    %v333 = vpack.c.b16 %v291, %v289
    %v334 = vpack.c.b16 %v294, %v292
    %v335 = vpack.c.b16 %v295, %v293
    %v336 = vpack.c.b16 %v298, %v296
    %v337 = vpack.c.b16 %v299, %v297
    %v338 = vpack.c.b16 %v302, %v300
    %v339 = vpack.c.b16 %v303, %v301
    %v340 = vpack.c.b16 %v306, %v304
    %v341 = vpack.c.b16 %v307, %v305
    %v342 = vpack.c.b16 %v310, %v308
    %v343 = vpack.c.b16 %v311, %v309
    %376 = vmatprep.subr.bf16.mxu0 %v327
    %377 = vmatpush1.bf16.msra.mxu0 %v326
    %378 = vmatprep.subr.bf16.mxu0 %v325
    %379 = vmatpush1.bf16.msra.mxu0 %v324
    %380 = vmatprep.subr.bf16.mxu0 %v323
    %381 = vmatpush1.bf16.msra.mxu0 %v322
    %382 = vmatprep.subr.bf16.mxu0 %v321
    %383 = vmatpush1.bf16.msra.mxu0 %v320
    %384 = vmatprep.subr.bf16.mxu0 %v319
    %385 = vmatpush1.bf16.msra.mxu0 %v318
    %386 = vmatprep.subr.bf16.mxu0 %v317
    %387 = vmatpush1.bf16.msra.mxu0 %v316
    %388 = vmatprep.subr.bf16.mxu0 %v315
    %389 = vmatpush1.bf16.msra.mxu0 %v314
    %390 = vmatprep.subr.bf16.mxu0 %v313
    %391 = vmatpush1.bf16.msra.mxu0 %v312
    %392 = vmatprep.subr.bf16.mxu0 %v343
    %393 = vmatpush2.bf16.msra.mxu0 %v342
    %394 = vmatprep.subr.bf16.mxu0 %v341
    %395 = vmatpush2.bf16.msra.mxu0 %v340
    %396 = vmatprep.subr.bf16.mxu0 %v339
    %397 = vmatpush2.bf16.msra.mxu0 %v338
    %398 = vmatprep.subr.bf16.mxu0 %v337
    %399 = vmatpush2.bf16.msra.mxu0 %v336
    %400 = vmatprep.subr.bf16.mxu0 %v335
    %401 = vmatpush2.bf16.msra.mxu0 %v334
    %402 = vmatprep.subr.bf16.mxu0 %v333
    %403 = vmatpush2.bf16.msra.mxu0 %v332
    %404 = vmatprep.subr.bf16.mxu0 %v331
    %405 = vmatpush2.bf16.msra.mxu0 %v330
    %406 = vmatprep.subr.bf16.mxu0 %v329
    %407 = vmatpush2.bf16.msra.mxu0 %v328
    %408 = vmatprep.mubr.bf16.mxu0 %v165
    %409 = vmatmul.mubr.bf16.gmra.mxu0 %v164
    %v410 = vpop.f32.mrf.mxu0
    %v411 = vadd.f32 %v211, %v410
    %v412 = vpop.f32.mrf.mxu0
    %v413 = vadd.f32 %v215, %v412
    %v414 = vpop.f32.mrf.mxu0
    %v415 = vadd.f32 %v211, %v414
    %v416 = vpop.f32.mrf.mxu0
    %v417 = vadd.f32 %v215, %v416
    %418 = vdwg.mxu0
    %v419 = vmax.f32 %v411, 0.0
    %v420 = vmax.f32 %v413, 0.0
    %v421 = vmax.f32 %v415, 0.0
    %v422 = vmax.f32 %v417, 0.0
    %v423 = vpack.c.bf16 %v421, %v419
    %v424 = vpack.c.bf16 %v422, %v420
    %v425 = vld [vmem:[#allocation6] sm:$0xf]
    %v426 = vld [vmem:[#allocation6 + $0x4] sm:$0xf]
    %v427 = vld [vmem:[#allocation6 + $0x8] sm:$0xf]
    %v428 = vld [vmem:[#allocation6 + $0xc] sm:$0xf]
    %v429 = vld [vmem:[#allocation6 + $0x10] sm:$0xf]
    %v430 = vld [vmem:[#allocation6 + $0x14] sm:$0xf]
    %v431 = vld [vmem:[#allocation6 + $0x18] sm:$0xf]
    %v432 = vld [vmem:[#allocation6 + $0x1c] sm:$0xf]
    %v433 = vld [vmem:[#allocation6 + $0x20] sm:$0xf]
    %v434 = vld [vmem:[#allocation6 + $0x24] sm:$0xf]
    %v435 = vld [vmem:[#allocation6 + $0x28] sm:$0xf]
    %v436 = vld [vmem:[#allocation6 + $0x2c] sm:$0xf]
    %v437 = vld [vmem:[#allocation6 + $0x30] sm:$0xf]
    %v438 = vld [vmem:[#allocation6 + $0x34] sm:$0xf]
    %v439 = vld [vmem:[#allocation6 + $0x38] sm:$0xf]
    %v440 = vld [vmem:[#allocation6 + $0x3c] sm:$0xf]
    %v441 = vld [vmem:[#allocation6 + $0x40] sm:$0xf]
    %v442 = vld [vmem:[#allocation6 + $0x44] sm:$0xf]
    %v443 = vld [vmem:[#allocation6 + $0x48] sm:$0xf]
    %v444 = vld [vmem:[#allocation6 + $0x4c] sm:$0xf]
    %v445 = vld [vmem:[#allocation6 + $0x50] sm:$0xf]
    %v446 = vld [vmem:[#allocation6 + $0x54] sm:$0xf]
    %v447 = vld [vmem:[#allocation6 + $0x58] sm:$0xf]
    %v448 = vld [vmem:[#allocation6 + $0x5c] sm:$0xf]
    %v449 = vld [vmem:[#allocation6 + $0x60] sm:$0xf]
    %v450 = vld [vmem:[#allocation6 + $0x64] sm:$0xf]
    %v451 = vld [vmem:[#allocation6 + $0x68] sm:$0xf]
    %v452 = vld [vmem:[#allocation6 + $0x6c] sm:$0xf]
    %v453 = vld [vmem:[#allocation6 + $0x70] sm:$0xf]
    %v454 = vld [vmem:[#allocation6 + $0x74] sm:$0xf]
    %v455 = vld [vmem:[#allocation6 + $0x78] sm:$0xf]
    %v456 = vld [vmem:[#allocation6 + $0x7c] sm:$0xf]
    %v457 = vlaneseq
    %v458 = vshrl.u32 %v457, 7
    %v459 = vsub.s32 0, %v458
    %v460 = vrot.slane %v69, %v459
    %v493 = vunpack.c.l.b16 %v425
    %v494 = vunpack.c.l.b16 %v426
    %v495 = vunpack.c.l.b16 %v427
    %v496 = vunpack.c.l.b16 %v428
    %v497 = vunpack.c.l.b16 %v429
    %v498 = vunpack.c.l.b16 %v430
    %v499 = vunpack.c.l.b16 %v431
    %v500 = vunpack.c.l.b16 %v432
    %v501 = vunpack.c.l.b16 %v433
    %v502 = vunpack.c.l.b16 %v434
    %v503 = vunpack.c.l.b16 %v435
    %v504 = vunpack.c.l.b16 %v436
    %v505 = vunpack.c.l.b16 %v437
    %v506 = vunpack.c.l.b16 %v438
    %v507 = vunpack.c.l.b16 %v439
    %v508 = vunpack.c.l.b16 %v440
    %v509 = vunpack.c.l.b16 %v441
    %v510 = vunpack.c.l.b16 %v442
    %v511 = vunpack.c.l.b16 %v443
    %v512 = vunpack.c.l.b16 %v444
    %v513 = vunpack.c.l.b16 %v445
    %v514 = vunpack.c.l.b16 %v446
    %v515 = vunpack.c.l.b16 %v447
    %v516 = vunpack.c.l.b16 %v448
    %v517 = vunpack.c.l.b16 %v449
    %v518 = vunpack.c.l.b16 %v450
    %v519 = vunpack.c.l.b16 %v451
    %v520 = vunpack.c.l.b16 %v452
    %v521 = vunpack.c.l.b16 %v453
    %v522 = vunpack.c.l.b16 %v454
    %v523 = vunpack.c.l.b16 %v455
    %v524 = vunpack.c.l.b16 %v456
    %v525 = vpack.c.b16 %v494, %v493
    %v526 = vpack.c.b16 %v496, %v495
    %v527 = vpack.c.b16 %v498, %v497
    %v528 = vpack.c.b16 %v500, %v499
    %v529 = vpack.c.b16 %v502, %v501
    %v530 = vpack.c.b16 %v504, %v503
    %v531 = vpack.c.b16 %v506, %v505
    %v532 = vpack.c.b16 %v508, %v507
    %v533 = vpack.c.b16 %v510, %v509
    %v534 = vpack.c.b16 %v512, %v511
    %v535 = vpack.c.b16 %v514, %v513
    %v536 = vpack.c.b16 %v516, %v515
    %v537 = vpack.c.b16 %v518, %v517
    %v538 = vpack.c.b16 %v520, %v519
    %v539 = vpack.c.b16 %v522, %v521
    %v540 = vpack.c.b16 %v524, %v523
    %557 = vmatprep.subr.bf16.mxu0 0
    %558 = vmatpush1.bf16.msra.mxu0 %v532
    %559 = vmatprep.subr.bf16.mxu0 0
    %560 = vmatpush1.bf16.msra.mxu0 %v531
    %561 = vmatprep.subr.bf16.mxu0 0
    %562 = vmatpush1.bf16.msra.mxu0 %v530
    %563 = vmatprep.subr.bf16.mxu0 0
    %564 = vmatpush1.bf16.msra.mxu0 %v529
    %565 = vmatprep.subr.bf16.mxu0 0
    %566 = vmatpush1.bf16.msra.mxu0 %v528
    %567 = vmatprep.subr.bf16.mxu0 0
    %568 = vmatpush1.bf16.msra.mxu0 %v527
    %569 = vmatprep.subr.bf16.mxu0 0
    %570 = vmatpush1.bf16.msra.mxu0 %v526
    %571 = vmatprep.subr.bf16.mxu0 0
    %572 = vmatpush1.bf16.msra.mxu0 %v525
    %573 = vmatprep.subr.bf16.mxu0 0
    %574 = vmatpush2.bf16.msra.mxu0 %v540
    %575 = vmatprep.subr.bf16.mxu0 0
    %576 = vmatpush2.bf16.msra.mxu0 %v539
    %577 = vmatprep.subr.bf16.mxu0 0
    %578 = vmatpush2.bf16.msra.mxu0 %v538
    %579 = vmatprep.subr.bf16.mxu0 0
    %580 = vmatpush2.bf16.msra.mxu0 %v537
    %581 = vmatprep.subr.bf16.mxu0 0
    %582 = vmatpush2.bf16.msra.mxu0 %v536
    %583 = vmatprep.subr.bf16.mxu0 0
    %584 = vmatpush2.bf16.msra.mxu0 %v535
    %585 = vmatprep.subr.bf16.mxu0 0
    %586 = vmatpush2.bf16.msra.mxu0 %v534
    %587 = vmatprep.subr.bf16.mxu0 0
    %588 = vmatpush2.bf16.msra.mxu0 %v533
    %589 = vmatprep.mubr.bf16.mxu0 %v424
    %590 = vmatmul.mubr.bf16.gmra.mxu0 %v423
    %v591 = vpop.f32.mrf.mxu0
    %v592 = vadd.f32 %v460, %v591
    %v593 = vpop.f32.mrf.mxu0
    %v594 = vpop.f32.mrf.mxu0
    %v595 = vadd.f32 %v460, %v594
    %v596 = vpop.f32.mrf.mxu0
    %597 = vdwg.mxu0
    %v598 = vtanh.pop %v592
    %v599 = vtanh.pop %v595
    %v600 = vlaneseq
    %v601 = vshrl.u32 %v600, 7
    %v602 = vsub.s32 1, %v601
    %v603 = vrot.slane %v69, %v602
    %v604 = vmul.f32 %v598, %v603
    %v605 = vmul.f32 %v599, %v603
    %vm606 = vcmask 23552
    %607 = vst.msk [vmem:[%s6] sm:$0xff] %vm606, %v604
    %608 = vst.msk [vmem:[%s6 + $0x8] sm:$0xff] %vm606, %v605
    // Predicated region
    $region38: #{actor_forward.1} parent=1 // pred_check
      _
    $region39: #{actor_forward.1} parent=1 // pred_check_branch
      %610 = sbr.rel (0) target = $region41
    $region40: #{actor_forward.1} parent=1 // pred_region
      _
    $region41: #{actor_forward.1} parent=1 // pred_fallthru
      _
    // Predicated region
    $region42: #{actor_forward.1} parent=1 // pred_check
      _
    $region43: #{actor_forward.1} parent=1 // pred_check_branch
      %612 = sbr.rel (0) target = $region45
    $region44: #{actor_forward.1} parent=1 // pred_region
      _
    $region45: #{actor_forward.1} parent=1 // pred_fallthru
      _
    %613 = vsyncpa [#allocation3], 1
    %614 = vsyncpa [#allocation5], 1

</llo_original>
